<compile_context>
chip_gen: v7x
topology: tpu7x:2x2x1
jax: 0.10.0
libtpu: 0.0.40
codegen_flags: <defaults>
</compile_context>

<pallas_src>
import functools

import jax
import jax.numpy as jnp
from jax.experimental import pallas as pl
from jax.experimental.pallas import tpu as pltpu

LANE = 128
SUBLANE = 8


def _round_up(x, m):
    return ((x + m - 1) // m) * m


def _floor_pow2(x):
    x = max(int(x), 1)
    return 1 << (x.bit_length() - 1)


# ----------------------------------------------------------------------------
# Plain-JAX glue: farthest point sampling / kNN / gather (data-dependent index
# ops; kept out of the kernel).
# ----------------------------------------------------------------------------
def farthest_point_sample(xyz, npoint):
    """xyz: [B, N, 3] -> centroid indices [B, npoint] (int32)."""
    B, N, _ = xyz.shape
    batch_idx = jnp.arange(B)

    def body(i, state):
        distance, farthest, centroids = state
        centroids = centroids.at[:, i].set(farthest)
        centroid = xyz[batch_idx, farthest, :][:, None, :]           # [B, 1, 3]
        dist = jnp.sum((xyz - centroid) ** 2, axis=-1)                # [B, N]
        distance = jnp.minimum(distance, dist)
        farthest = jnp.argmax(distance, axis=-1).astype(jnp.int32)
        return distance, farthest, centroids

    init = (jnp.full((B, N), 1e10, dtype=xyz.dtype),
            jnp.zeros((B,), dtype=jnp.int32),
            jnp.zeros((B, npoint), dtype=jnp.int32))
    _, _, centroids = jax.lax.fori_loop(0, npoint, body, init)
    return centroids


def index_points(points, idx):
    """points: [B, N, C]; idx: [B, ...] -> [B, ..., C]."""
    B = points.shape[0]
    C = points.shape[-1]
    idx_flat = idx.reshape(B, -1)
    gathered = jnp.take_along_axis(points, idx_flat[..., None], axis=1)
    return gathered.reshape(idx.shape + (C,))


def square_distance(src, dst):
    """src: [B, N, C], dst: [B, M, C] -> [B, N, M] squared distances."""
    dist = -2.0 * jnp.matmul(src, jnp.transpose(dst, (0, 2, 1)))
    dist = dist + jnp.sum(src ** 2, axis=-1)[..., None]
    dist = dist + jnp.sum(dst ** 2, axis=-1)[:, None, :]
    return dist


def knn_point(nsample, xyz, new_xyz):
    sqrdists = square_distance(new_xyz, xyz)                          # [B, S, N]
    _, group_idx = jax.lax.top_k(-sqrdists, nsample)                  # smallest dists
    return group_idx


def sample_and_group(npoint, nsample, xyz, points):
    """xyz: [B, N, 3], points: [B, N, D] or None -> new_xyz [B,S,3], grouped [B,S,K,3+D]."""
    fps_idx = farthest_point_sample(xyz, npoint)                      # [B, S]
    new_xyz = index_points(xyz, fps_idx)                              # [B, S, 3]
    idx = knn_point(nsample, xyz, new_xyz)                            # [B, S, K]
    grouped_xyz = index_points(xyz, idx)                              # [B, S, K, 3]
    grouped_xyz_norm = grouped_xyz - new_xyz[:, :, None, :]
    if points is not None:
        grouped_points = index_points(points, idx)                    # [B, S, K, D]
        new_points = jnp.concatenate([grouped_xyz_norm, grouped_points], axis=-1)
    else:
        new_points = grouped_xyz_norm
    return new_xyz, new_points


def sample_and_group_all(xyz, points):
    B, N, C = xyz.shape
    new_xyz = jnp.mean(xyz, axis=1, keepdims=True)                    # [B, 1, 3]
    grouped_xyz = xyz[:, None, :, :] - new_xyz[:, None, :, :]         # [B, 1, N, 3]
    if points is not None:
        new_points = jnp.concatenate([grouped_xyz, points[:, None, :, :]], axis=-1)
    else:
        new_points = grouped_xyz
    return new_xyz, new_points


# ----------------------------------------------------------------------------
# Pallas kernel: fused (1x1 conv [BN folded] -> ReLU)* -> running max over K.
# ----------------------------------------------------------------------------
def _make_mlp_max_kernel(n_layers, tile_s, tile_k, k_actual, k_padded):
    mask_tail = (k_padded != k_actual)

    def kernel(g_ref, *refs):
        out_ref = refs[2 * n_layers]
        ki = pl.program_id(2)

        # (1, TILE_S, TILE_K, C_in) bf16 -> (TILE_S*TILE_K, C_in); C_in stays unpadded.
        x = g_ref[...].reshape(tile_s * tile_k, g_ref.shape[-1])
        for i in range(n_layers):
            w = refs[2 * i][...]                                        # (Ci, Co_p) bf16
            z = jnp.dot(x, w, preferred_element_type=jnp.float32)      # MXU, f32 accum
            if i + 1 < n_layers:
                b = refs[2 * i + 1][...]                                # (1, Co_p) f32
                # ReLU fused with the bf16 downcast (half-width elementwise pass).
                x = jnp.maximum((z + b).astype(w.dtype), 0.0)
            else:
                # Last layer: bias + ReLU are deferred past the K-max (bias is a
                # per-channel constant over K and ReLU is monotone).
                x = z

        cout = x.shape[-1]
        x = x.reshape(tile_s, tile_k, cout)
        if mask_tail:
            # Zero-padded ragged K tail -> mask to -inf so it never wins the max.
            k_idx = ki * tile_k + jax.lax.broadcasted_iota(jnp.int32, (1, tile_k, 1), 1)
            x = jnp.where(k_idx < k_actual, x, -jnp.inf)
        tile_max = jnp.max(x, axis=1)                                   # (TILE_S, Cout_p)

        # Running max accumulates directly in the resident output block.
        @pl.when(ki == 0)
        def _():
            out_ref[...] = tile_max[None]

        @pl.when(ki > 0)
        def _():
            out_ref[...] = jnp.maximum(out_ref[...], tile_max[None])

        @pl.when(ki == pl.num_programs(2) - 1)
        def _():
            b_last = refs[2 * n_layers - 1][...]                        # (1, Cout_p) f32
            # relu(max_k(Wx) + b) == max_k(relu(Wx + b)).
            out_ref[...] = jnp.maximum(out_ref[...] + b_last, 0.0)

    return kernel


def fused_mlp_max(grouped, params, *, tile_s=256, tile_k=256):
    """grouped: [B, S, K, C_in] (any float dtype) -> [B, S, C_out_last] float32."""
    B, S, K, Cin = grouped.shape
    n_layers = len(params)

    # Hidden / output channels padded to 128 lanes (lane-dense matmuls + stores);
    # the INPUT channel dim is left at its true size (dominant HBM stream).
    co_pads = [_round_up(w.shape[1], LANE) for (w, _) in params]
    cout_pad = co_pads[-1]
    max_chan = max(co_pads)

    # Generation-aware VMEM budget (v5e/v6e: 128 MiB, v7x: 64 MiB per TensorCore).
    try:
        vmem_cap = int(pltpu.get_tpu_info().vmem_capacity_bytes)
    except Exception:
        vmem_cap = 64 * 1024 * 1024
    vmem_limit = int(min(0.75 * vmem_cap, 100 * 1024 * 1024))

    # Rough live bytes per (s, k) row: double-buffered bf16 input + f32 matmul result
    # + bf16 activations for the next layer.  Cap rows so v7x never overflows VMEM.
    bytes_per_row = 4 * Cin + 4 * max_chan + 2 * max_chan + 16
    rows_budget = max(1024, (vmem_limit // 2) // bytes_per_row)

    tile_k_cap = max(16, ((rows_budget // SUBLANE) // 16) * 16)
    TILE_K = min(_round_up(K, 16), _round_up(tile_k, 16), tile_k_cap)   # 16: bf16 packing
    K_pad = _round_up(K, TILE_K)
    max_tile_s = max(SUBLANE, _floor_pow2(rows_budget // TILE_K))
    TILE_S = min(_round_up(S, SUBLANE), _round_up(tile_s, SUBLANE), max_tile_s)
    S_pad = _round_up(S, TILE_S)

    g = grouped.astype(jnp.bfloat16)                 # no-op if the producer already cast
    pad_s, pad_k = S_pad - S, K_pad - K
    if pad_s or pad_k:
        # Single constant zero-pad; ragged K tail is masked inside the kernel.
        g = jnp.pad(g, ((0, 0), (0, pad_s), (0, pad_k), (0, 0)))

    in_specs = [pl.BlockSpec((1, TILE_S, TILE_K, Cin),
                             lambda b, si, ki: (b, si, ki, 0))]
    args = [g]
    flops_per_point = 0
    for li, (w, bias) in enumerate(params):
        ci, co = w.shape
        ci_p = Cin if li == 0 else co_pads[li - 1]
        co_p = co_pads[li]
        w_p = jnp.zeros((ci_p, co_p), jnp.float32).at[:ci, :co].set(w).astype(jnp.bfloat16)
        b_p = jnp.zeros((1, co_p), jnp.float32).at[0, :co].set(bias)
        in_specs.append(pl.BlockSpec((ci_p, co_p), lambda b, si, ki: (0, 0)))
        in_specs.append(pl.BlockSpec((1, co_p), lambda b, si, ki: (0, 0)))
        args.extend([w_p, b_p])
        flops_per_point += 2 * ci_p * co_p

    grid = (B, S_pad // TILE_S, K_pad // TILE_K)
    kernel = _make_mlp_max_kernel(n_layers, TILE_S, TILE_K, K, K_pad)

    bytes_accessed = (int(g.size) * 2
                      + sum(int(a.size) * a.dtype.itemsize for a in args[1:])
                      + B * S_pad * cout_pad * 4)
    cost = pl.CostEstimate(flops=int(B) * S_pad * K_pad * flops_per_point,
                           transcendentals=0,
                           bytes_accessed=int(bytes_accessed))

    out = pl.pallas_call(
        kernel,
        out_shape=jax.ShapeDtypeStruct((B, S_pad, cout_pad), jnp.float32),
        grid=grid,
        in_specs=in_specs,
        out_specs=pl.BlockSpec((1, TILE_S, cout_pad), lambda b, si, ki: (b, si, 0)),
        compiler_params=pltpu.CompilerParams(
            dimension_semantics=("parallel", "parallel", "arbitrary"),
            vmem_limit_bytes=vmem_limit),
        cost_estimate=cost,
    )(*args)

    Cout = params[-1][0].shape[1]
    return out[:, :S, :Cout]


# ----------------------------------------------------------------------------
# Module wrapper (matches PointNetSetAbstraction.forward semantics, eval-mode BN).
# ----------------------------------------------------------------------------
def init_params(key, in_channel, mlp):
    """Deterministic synthetic Conv2d(1x1) + BatchNorm2d (eval) parameters.
    BN folded: W_fused = W * scale (per out-channel), bias_fused = (b - mean)*scale + beta."""
    params = []
    last = in_channel
    eps = 1e-5
    for out in mlp:
        key, kw, kb, kg, kbt, km, kv = jax.random.split(key, 7)
        W = 0.1 * jax.random.normal(kw, (last, out), jnp.float32)        # conv weight^T
        b = 0.1 * jax.random.normal(kb, (out,), jnp.float32)             # conv bias
        gamma = 1.0 + 0.1 * jax.random.normal(kg, (out,), jnp.float32)
        beta = 0.1 * jax.random.normal(kbt, (out,), jnp.float32)
        rmean = 0.1 * jax.random.normal(km, (out,), jnp.float32)
        rvar = jnp.abs(jax.random.normal(kv, (out,), jnp.float32)) + 0.5
        scale = gamma / jnp.sqrt(rvar + eps)
        W_fused = W * scale[None, :]
        bias_fused = (b - rmean) * scale + beta
        params.append((W_fused, bias_fused))
        last = out
    return params


@functools.partial(jax.jit, static_argnames=("npoint", "nsample", "group_all"))
def pointnet_set_abstraction(xyz_bcn, points_bdn, params, *, npoint, nsample, group_all):
    """xyz_bcn: [B, 3, N], points_bdn: [B, D, N] or None.
    Returns (new_xyz [B, 3, S], new_points [B, C_out, S])."""
    xyz = jnp.transpose(xyz_bcn, (0, 2, 1))                              # [B, N, 3]
    points = jnp.transpose(points_bdn, (0, 2, 1)) if points_bdn is not None else None
    if group_all:
        new_xyz, grouped = sample_and_group_all(xyz, points)             # [B,1,N,3+D]
    else:
        new_xyz, grouped = sample_and_group(npoint, nsample, xyz, points)  # [B,S,K,3+D]
    # bf16 cast next to the producer so XLA fuses it into the gather/concat.
    new_points = fused_mlp_max(grouped.astype(jnp.bfloat16), params)     # [B, S, C_out]
    return (jnp.transpose(new_xyz, (0, 2, 1)),
            jnp.transpose(new_points, (0, 2, 1)))


def _reference_mlp_max(grouped, params):
    """Plain-JAX reference of the fused kernel (bf16-rounded inputs/weights, f32 math)."""
    x = grouped.astype(jnp.bfloat16).astype(jnp.float32)
    for (w, b) in params:
        wq = w.astype(jnp.bfloat16).astype(jnp.float32)
        x = jnp.maximum(jnp.einsum("bskc,cd->bskd", x, wq) + b, 0.0)
    return jnp.max(x, axis=2)


if __name__ == "__main__":
    B, N, D = 2, 32, 4
    npoint, nsample = 8, 8
    mlp = [16, 32]
    in_channel = 3 + D

    key = jax.random.PRNGKey(0)
    kx, kp, kparam = jax.random.split(key, 3)
    xyz = jax.random.normal(kx, (B, 3, N), jnp.float32)
    points = jax.random.normal(kp, (B, D, N), jnp.float32)
    params = init_params(kparam, in_channel, mlp)

    new_xyz, new_points = pointnet_set_abstraction(
        xyz, points, params, npoint=npoint, nsample=nsample, group_all=False)
    jax.block_until_ready((new_xyz, new_points))
    assert new_xyz.shape == (B, 3, npoint)
    assert new_points.shape == (B, mlp[-1], npoint)

    # group_all path (S=1, K=N) also exercises the kernel.
    new_xyz_ga, new_points_ga = pointnet_set_abstraction(
        xyz, points, params, npoint=1, nsample=N, group_all=True)
    jax.block_until_ready((new_xyz_ga, new_points_ga))
    assert new_points_ga.shape == (B, mlp[-1], 1)

    # Correctness check against a plain-JAX reference (bf16 matmuls -> loose tol).
    xyz_bnc = jnp.transpose(xyz, (0, 2, 1))
    pts_bnd = jnp.transpose(points, (0, 2, 1))
    _, grouped = sample_and_group(npoint, nsample, xyz_bnc, pts_bnd)
    ref = _reference_mlp_max(grouped, params)
    got = jnp.transpose(new_points, (0, 2, 1))
    err = float(jnp.max(jnp.abs(got - ref)))
    assert jnp.allclose(got, ref, atol=1e-1, rtol=1e-1), err

    print("KERNEL_OK")
</pallas_src>

<mosaic_0001>
module attributes {stable_mosaic.version = 11 : i64} {
  func.func @kernel(%arg0: i32, %arg1: i32, %arg2: i32, %arg3: memref<1x8x16x7xbf16, #tpu.memory_space<vmem>>, %arg4: memref<7x128xbf16, #tpu.memory_space<vmem>>, %arg5: memref<1x128xf32, #tpu.memory_space<vmem>>, %arg6: memref<128x128xbf16, #tpu.memory_space<vmem>>, %arg7: memref<1x128xf32, #tpu.memory_space<vmem>>, %arg8: memref<1x8x128xf32, #tpu.memory_space<vmem>>) attributes {dimension_semantics = [#tpu.dimension_semantics<parallel>, #tpu.dimension_semantics<parallel>, #tpu.dimension_semantics<arbitrary>], iteration_bounds = array<i64: 2, 1, 1>, scalar_prefetch = 0 : i64, scratch_operands = 0 : i64, tpu.core_type = #tpu.core_type<tc>, window_params = [{transform_indices = @transform_0, window_bounds = array<i64: 1, 8, 16, 7>}, {pipeline_mode = #tpu.pipeline_mode<synchronous>, transform_indices = @transform_1, window_bounds = array<i64: 7, 128>}, {pipeline_mode = #tpu.pipeline_mode<synchronous>, transform_indices = @transform_2, window_bounds = array<i64: 1, 128>}, {pipeline_mode = #tpu.pipeline_mode<synchronous>, transform_indices = @transform_3, window_bounds = array<i64: 128, 128>}, {pipeline_mode = #tpu.pipeline_mode<synchronous>, transform_indices = @transform_4, window_bounds = array<i64: 1, 128>}, {transform_indices = @transform_5, window_bounds = array<i64: 1, 8, 128>}]} {
    %c0 = arith.constant 0 : index
    %c0_0 = arith.constant 0 : index
    %c0_1 = arith.constant 0 : index
    %c0_2 = arith.constant 0 : index
    %0 = vector.load %arg3[%c0, %c0_0, %c0_1, %c0_2] : memref<1x8x16x7xbf16, #tpu.memory_space<vmem>>, vector<1x8x16x7xbf16>
    %1 = vector.shape_cast %0 : vector<1x8x16x7xbf16> to vector<128x7xbf16>
    %c0_3 = arith.constant 0 : index
    %c0_4 = arith.constant 0 : index
    %2 = vector.load %arg4[%c0_3, %c0_4] : memref<7x128xbf16, #tpu.memory_space<vmem>>, vector<7x128xbf16>
    %cst = arith.constant dense<0.000000e+00> : vector<128x128xf32>
    %3 = tpu.matmul %1, %2, %cst {dimension_numbers = #tpu.dot_dimension_numbers<[1], [0], [0], [1], [0, 0, 1, 1], [], []>} : vector<128x7xbf16>, vector<7x128xbf16>, vector<128x128xf32> -> vector<128x128xf32>
    %c0_5 = arith.constant 0 : index
    %c0_6 = arith.constant 0 : index
    %4 = vector.load %arg5[%c0_5, %c0_6] : memref<1x128xf32, #tpu.memory_space<vmem>>, vector<1x128xf32>
    %5 = vector.broadcast %4 : vector<1x128xf32> to vector<128x128xf32>
    %6 = arith.addf %3, %5 : vector<128x128xf32>
    %7 = arith.truncf %6 : vector<128x128xf32> to vector<128x128xbf16>
    %cst_7 = arith.constant 0.000000e+00 : bf16
    %8 = vector.broadcast %cst_7 : bf16 to vector<128x128xbf16>
    %9 = arith.maximumf %7, %8 : vector<128x128xbf16>
    %c0_8 = arith.constant 0 : index
    %c0_9 = arith.constant 0 : index
    %10 = vector.load %arg6[%c0_8, %c0_9] : memref<128x128xbf16, #tpu.memory_space<vmem>>, vector<128x128xbf16>
    %cst_10 = arith.constant dense<0.000000e+00> : vector<128x128xf32>
    %11 = tpu.matmul %9, %10, %cst_10 {dimension_numbers = #tpu.dot_dimension_numbers<[1], [0], [0], [1], [0, 0, 1, 1], [], []>} : vector<128x128xbf16>, vector<128x128xbf16>, vector<128x128xf32> -> vector<128x128xf32>
    %12 = vector.shape_cast %11 : vector<128x128xf32> to vector<8x16x128xf32>
    %c16_i32 = arith.constant 16 : i32
    %13 = arith.muli %arg2, %c16_i32 : i32
    %14 = tpu.iota {dimensions = array<i32: 1>} : vector<1x16x1xi32>
    %15 = vector.broadcast %13 : i32 to vector<1x16x1xi32>
    %16 = arith.addi %15, %14 : vector<1x16x1xi32>
    %c8_i32 = arith.constant 8 : i32
    %17 = vector.broadcast %c8_i32 : i32 to vector<1x16x1xi32>
    %18 = arith.cmpi slt, %16, %17 : vector<1x16x1xi32>
    %cst_11 = arith.constant 0xFF800000 : f32
    %19 = vector.shape_cast %18 : vector<1x16x1xi1> to vector<1x16x1xi1>
    %20 = vector.broadcast %19 : vector<1x16x1xi1> to vector<8x16x128xi1>
    %21 = vector.broadcast %cst_11 : f32 to vector<8x16x128xf32>
    %22 = arith.select %20, %12, %21 : vector<8x16x128xi1>, vector<8x16x128xf32>
    %cst_12 = arith.constant dense<0xFF800000> : vector<8x128xf32>
    %23 = vector.multi_reduction <maximumf>, %22, %cst_12 [1] : vector<8x16x128xf32> to vector<8x128xf32>
    %c0_i32 = arith.constant 0 : i32
    %24 = arith.cmpi eq, %arg2, %c0_i32 : i32
    %25 = arith.extui %24 : i1 to i32
    %c0_i32_13 = arith.constant 0 : i32
    %26 = arith.cmpi ne, %25, %c0_i32_13 : i32
    scf.if %26 {
      %33 = vector.shape_cast %23 : vector<8x128xf32> to vector<1x8x128xf32>
      %c0_18 = arith.constant 0 : index
      %c0_19 = arith.constant 0 : index
      %c0_20 = arith.constant 0 : index
      %34 = vector.load %arg8[%c0_18, %c0_19, %c0_20] : memref<1x8x128xf32, #tpu.memory_space<vmem>>, vector<1x8x128xf32>
      tpu.vector_store %arg8[%c0_18, %c0_19, %c0_20], %33 {strides = array<i32>} : memref<1x8x128xf32, #tpu.memory_space<vmem>>, vector<1x8x128xf32>,
    } else {
    }
    %c0_i32_14 = arith.constant 0 : i32
    %27 = arith.cmpi sgt, %arg2, %c0_i32_14 : i32
    %28 = arith.extui %27 : i1 to i32
    %c0_i32_15 = arith.constant 0 : i32
    %29 = arith.cmpi ne, %28, %c0_i32_15 : i32
    scf.if %29 {
      %c0_18 = arith.constant 0 : index
      %c0_19 = arith.constant 0 : index
      %c0_20 = arith.constant 0 : index
      %33 = vector.load %arg8[%c0_18, %c0_19, %c0_20] : memref<1x8x128xf32, #tpu.memory_space<vmem>>, vector<1x8x128xf32>
      %34 = vector.shape_cast %23 : vector<8x128xf32> to vector<1x8x128xf32>
      %35 = arith.maximumf %33, %34 : vector<1x8x128xf32>
      %c0_21 = arith.constant 0 : index
      %c0_22 = arith.constant 0 : index
      %c0_23 = arith.constant 0 : index
      %36 = vector.load %arg8[%c0_21, %c0_22, %c0_23] : memref<1x8x128xf32, #tpu.memory_space<vmem>>, vector<1x8x128xf32>
      tpu.vector_store %arg8[%c0_21, %c0_22, %c0_23], %35 {strides = array<i32>} : memref<1x8x128xf32, #tpu.memory_space<vmem>>, vector<1x8x128xf32>,
    } else {
    }
    %c0_i32_16 = arith.constant 0 : i32
    %30 = arith.cmpi eq, %arg2, %c0_i32_16 : i32
    %31 = arith.extui %30 : i1 to i32
    %c0_i32_17 = arith.constant 0 : i32
    %32 = arith.cmpi ne, %31, %c0_i32_17 : i32
    scf.if %32 {
      %c0_18 = arith.constant 0 : index
      %c0_19 = arith.constant 0 : index
      %33 = vector.load %arg7[%c0_18, %c0_19] : memref<1x128xf32, #tpu.memory_space<vmem>>, vector<1x128xf32>
      %c0_20 = arith.constant 0 : index
      %c0_21 = arith.constant 0 : index
      %c0_22 = arith.constant 0 : index
      %34 = vector.load %arg8[%c0_20, %c0_21, %c0_22] : memref<1x8x128xf32, #tpu.memory_space<vmem>>, vector<1x8x128xf32>
      %35 = vector.shape_cast %33 : vector<1x128xf32> to vector<1x1x128xf32>
      %36 = vector.broadcast %35 : vector<1x1x128xf32> to vector<1x8x128xf32>
      %37 = arith.addf %34, %36 : vector<1x8x128xf32>
      %cst_23 = arith.constant 0.000000e+00 : f32
      %38 = vector.broadcast %cst_23 : f32 to vector<1x8x128xf32>
      %39 = arith.maximumf %37, %38 : vector<1x8x128xf32>
      %c0_24 = arith.constant 0 : index
      %c0_25 = arith.constant 0 : index
      %c0_26 = arith.constant 0 : index
      %40 = vector.load %arg8[%c0_24, %c0_25, %c0_26] : memref<1x8x128xf32, #tpu.memory_space<vmem>>, vector<1x8x128xf32>
      tpu.vector_store %arg8[%c0_24, %c0_25, %c0_26], %39 {strides = array<i32>} : memref<1x8x128xf32, #tpu.memory_space<vmem>>, vector<1x8x128xf32>,
    } else {
    }
    return
  }
  func.func @transform_0(%arg0: i32, %arg1: i32, %arg2: i32) -> (i32, i32, i32, i32) {
    %c0_i32 = arith.constant 0 : i32
    %c0_i32_0 = arith.constant 0 : i32
    return %arg0, %arg1, %arg2, %c0_i32 : i32, i32, i32, i32
  }
  func.func @transform_1(%arg0: i32, %arg1: i32, %arg2: i32) -> (i32, i32) {
    %c0_i32 = arith.constant 0 : i32
    %c0_i32_0 = arith.constant 0 : i32
    %c0_i32_1 = arith.constant 0 : i32
    return %c0_i32, %c0_i32_0 : i32, i32
  }
  func.func @transform_2(%arg0: i32, %arg1: i32, %arg2: i32) -> (i32, i32) {
    %c0_i32 = arith.constant 0 : i32
    %c0_i32_0 = arith.constant 0 : i32
    %c0_i32_1 = arith.constant 0 : i32
    return %c0_i32, %c0_i32_0 : i32, i32
  }
  func.func @transform_3(%arg0: i32, %arg1: i32, %arg2: i32) -> (i32, i32) {
    %c0_i32 = arith.constant 0 : i32
    %c0_i32_0 = arith.constant 0 : i32
    %c0_i32_1 = arith.constant 0 : i32
    return %c0_i32, %c0_i32_0 : i32, i32
  }
  func.func @transform_4(%arg0: i32, %arg1: i32, %arg2: i32) -> (i32, i32) {
    %c0_i32 = arith.constant 0 : i32
    %c0_i32_0 = arith.constant 0 : i32
    %c0_i32_1 = arith.constant 0 : i32
    return %c0_i32, %c0_i32_0 : i32, i32
  }
  func.func @transform_5(%arg0: i32, %arg1: i32, %arg2: i32) -> (i32, i32, i32) {
    %c0_i32 = arith.constant 0 : i32
    %c0_i32_0 = arith.constant 0 : i32
    return %arg0, %arg1, %c0_i32 : i32, i32, i32
  }
}

</mosaic_0001>

<llo_original>
// kernel: custom-call.8
$region0: #{custom-call.8}
  %s0 = inlined_call_operand.vmem [shape: f32[2,32], index: 0, kind: output, shape index: {}]

// kernel: pointnet_set_abstraction.1
$region0: #{pointnet_set_abstraction.1}
  #allocation0 [shape = 'u32[]', space=smem, size = 0x4, offset = 0x4, fixed_abs, tag = 'smem constant byte address 0x4 - core index']
  #allocation1 [shape = 'u32[144,128]{1,0:T(1,128)}', space=vmem, size = 0x12000, scoped, tag = 'internal scratch']
  %s0 = inlined_call_operand.vmem [shape: bf16[2,8,16,7], index: 0, kind: input, shape index: {}]
  %s1 = inlined_call_operand.vmem [shape: bf16[7,128], index: 1, kind: input, shape index: {}]
  %s2 = inlined_call_operand.vmem [shape: f32[1,128], index: 2, kind: input, shape index: {}]
  %s3 = inlined_call_operand.vmem [shape: bf16[128,128], index: 3, kind: input, shape index: {}]
  %s4 = inlined_call_operand.vmem [shape: f32[1,128], index: 4, kind: input, shape index: {}]
  %s5 = inlined_call_operand.vmem [shape: f32[2,8,128], index: 5, kind: output, shape index: {}]
  %s6 = sld [smem:[#allocation0]]
  $region65: #{pointnet_set_abstraction.1} parent=0
    _
  %s8 = ssub.s32 1, %s6
  %s9 = scalar_select 0, %s8, %s6
  loop: start=0, step=1, limit=4
  $region2: #{pointnet_set_abstraction.1} parent=0 // loop_pre_header
    _
  $region3: #{pointnet_set_abstraction.1} parent=0 // loop_header
    %s11 = sphi 0, %s15
    %p12 = scmp.ge.s32.totalorder %s11, 4
    %s18 = sphi 0, %s37
    %s19 = sphi 0, %s33
    %s20 = sphi 0, %s29
    %s21 = sphi 0, %s18
    %s22 = sphi 0, %s19
    %s23 = sphi 0, %s20
    %s24 = sphi 0, %s21
    %s25 = sphi 0, %s22
    %s26 = sphi 0, %s23
    %s44 = sphi 0, %s46
    %s47 = sphi 0, %s44
    %s48 = sphi 0, %s47
    %s64 = sphi 0, %s48
    %s68 = sphi 0, %s68
    %s70 = sphi 0, %s68
    %s71 = sphi 0, %s70
    %s85 = sphi 0, %s71
    %s89 = sphi 0, %s89
    %s91 = sphi 0, %s89
    %s92 = sphi 0, %s91
    %s106 = sphi 0, %s92
    %s110 = sphi 0, %s110
    %s112 = sphi 0, %s110
    %s113 = sphi 0, %s112
    %s127 = sphi 0, %s113
    %s131 = sphi 0, %s131
    %s133 = sphi 0, %s131
    %s134 = sphi 0, %s133
    %s148 = sphi 0, %s134
    %s156 = sphi 0, %s158
    %s159 = sphi 0, %s156
    %s160 = sphi 0, %s159
    %s176 = sphi 0, %s160
  $region4: #{pointnet_set_abstraction.1} parent=0 // loop_header_branch
    %14 = sbr.rel (%p12) target = $region8
  $region5: #{pointnet_set_abstraction.1} parent=0 // loop_body
    %s16 = ssub.s32 %s11, 1
    %s17 = ssub.s32 %s11, 2
    %s27 = sadd.s32 1, %s20
    %p28 = scmp.ge.s32.totalorder %s27, 1
    %s29 = scalar_select %p28, 0, %s27
    %s30 = sadd.s32 1, %s19
    %s31 = scalar_select %p28, %s30, %s19
    %p32 = scmp.ge.s32.totalorder %s31, 1
    %s33 = scalar_select %p32, 0, %s31
    %s34 = sadd.s32 1, %s18
    %s35 = scalar_select %p32, %s34, %s18
    %p36 = scmp.ge.s32.totalorder %s35, 2
    %s37 = scalar_select %p36, 0, %s35
    %s38 = ssub.s32 %s18, %s37
    %s39 = ssub.s32 %s19, %s33
    %s40 = sor.u32 %s38, %s39
    %s41 = ssub.s32 %s20, %s29
    %s42 = sor.u32 %s40, %s41
    %p43 = scmp.eq.s32.totalorder %s42, 0
    %s45 = sadd.s32 %s44, 1
    %s46 = scalar_select %p43, %s44, %s45
    %p49 = pneg %p43
    %p50 = scmp.eq.s32.totalorder %s11, 1
    %p51 = por %p49, %p50
    %p52 = scmp.ne.s32.totalorder %s44, %s47
    %p53 = scmp.eq.s32.totalorder %s11, 0
    %p54 = por %p52, %p53
    %p55 = scmp.ne.s32.totalorder %s44, %s47
    %p56 = scmp.eq.s32.totalorder %s16, 1
    %p57 = por %p55, %p56
    %p58 = scmp.ne.s32.totalorder %s47, %s48
    %p59 = scmp.eq.s32.totalorder %s16, 0
    %p60 = por %p58, %p59
    %p61 = scmp.ne.s32.totalorder %s47, %s48
    %p62 = scmp.eq.s32.totalorder %s17, 1
    %p63 = por %p61, %p62
    %p65 = scmp.ne.s32.totalorder %s48, %s64
    %p66 = scmp.eq.s32.totalorder %s17, 0
    %p67 = por %p65, %p66
    %s69 = sadd.s32 %s68, 1
    %p72 = scmp.eq.s32.totalorder %s11, 1
    %p73 = scmp.ne.s32.totalorder %s68, %s70
    %p74 = scmp.eq.s32.totalorder %s11, 0
    %p75 = por %p73, %p74
    %p76 = scmp.ne.s32.totalorder %s68, %s70
    %p77 = scmp.eq.s32.totalorder %s16, 1
    %p78 = por %p76, %p77
    %p79 = scmp.ne.s32.totalorder %s70, %s71
    %p80 = scmp.eq.s32.totalorder %s16, 0
    %p81 = por %p79, %p80
    %p82 = scmp.ne.s32.totalorder %s70, %s71
    %p83 = scmp.eq.s32.totalorder %s17, 1
    %p84 = por %p82, %p83
    %p86 = scmp.ne.s32.totalorder %s71, %s85
    %p87 = scmp.eq.s32.totalorder %s17, 0
    %p88 = por %p86, %p87
    %s90 = sadd.s32 %s89, 1
    %p93 = scmp.eq.s32.totalorder %s11, 1
    %p94 = scmp.ne.s32.totalorder %s89, %s91
    %p95 = scmp.eq.s32.totalorder %s11, 0
    %p96 = por %p94, %p95
    %p97 = scmp.ne.s32.totalorder %s89, %s91
    %p98 = scmp.eq.s32.totalorder %s16, 1
    %p99 = por %p97, %p98
    %p100 = scmp.ne.s32.totalorder %s91, %s92
    %p101 = scmp.eq.s32.totalorder %s16, 0
    %p102 = por %p100, %p101
    %p103 = scmp.ne.s32.totalorder %s91, %s92
    %p104 = scmp.eq.s32.totalorder %s17, 1
    %p105 = por %p103, %p104
    %p107 = scmp.ne.s32.totalorder %s92, %s106
    %p108 = scmp.eq.s32.totalorder %s17, 0
    %p109 = por %p107, %p108
    %s111 = sadd.s32 %s110, 1
    %p114 = scmp.eq.s32.totalorder %s11, 1
    %p115 = scmp.ne.s32.totalorder %s110, %s112
    %p116 = scmp.eq.s32.totalorder %s11, 0
    %p117 = por %p115, %p116
    %p118 = scmp.ne.s32.totalorder %s110, %s112
    %p119 = scmp.eq.s32.totalorder %s16, 1
    %p120 = por %p118, %p119
    %p121 = scmp.ne.s32.totalorder %s112, %s113
    %p122 = scmp.eq.s32.totalorder %s16, 0
    %p123 = por %p121, %p122
    %p124 = scmp.ne.s32.totalorder %s112, %s113
    %p125 = scmp.eq.s32.totalorder %s17, 1
    %p126 = por %p124, %p125
    %p128 = scmp.ne.s32.totalorder %s113, %s127
    %p129 = scmp.eq.s32.totalorder %s17, 0
    %p130 = por %p128, %p129
    %s132 = sadd.s32 %s131, 1
    %p135 = scmp.eq.s32.totalorder %s11, 1
    %p136 = scmp.ne.s32.totalorder %s131, %s133
    %p137 = scmp.eq.s32.totalorder %s11, 0
    %p138 = por %p136, %p137
    %p139 = scmp.ne.s32.totalorder %s131, %s133
    %p140 = scmp.eq.s32.totalorder %s16, 1
    %p141 = por %p139, %p140
    %p142 = scmp.ne.s32.totalorder %s133, %s134
    %p143 = scmp.eq.s32.totalorder %s16, 0
    %p144 = por %p142, %p143
    %p145 = scmp.ne.s32.totalorder %s133, %s134
    %p146 = scmp.eq.s32.totalorder %s17, 1
    %p147 = por %p145, %p146
    %p149 = scmp.ne.s32.totalorder %s134, %s148
    %p150 = scmp.eq.s32.totalorder %s17, 0
    %p151 = por %p149, %p150
    %s152 = ssub.s32 %s18, %s37
    %s153 = ssub.s32 %s19, %s33
    %s154 = sor.u32 %s152, %s153
    %p155 = scmp.eq.s32.totalorder %s154, 0
    %s157 = sadd.s32 %s156, 1
    %s158 = scalar_select %p155, %s156, %s157
    %p161 = pneg %p155
    %p162 = scmp.eq.s32.totalorder %s11, 1
    %p163 = por %p161, %p162
    %p164 = scmp.ne.s32.totalorder %s156, %s159
    %p165 = scmp.eq.s32.totalorder %s11, 0
    %p166 = por %p164, %p165
    %p167 = scmp.ne.s32.totalorder %s156, %s159
    %p168 = scmp.eq.s32.totalorder %s16, 1
    %p169 = por %p167, %p168
    %p170 = scmp.ne.s32.totalorder %s159, %s160
    %p171 = scmp.eq.s32.totalorder %s16, 0
    %p172 = por %p170, %p171
    %p173 = scmp.ne.s32.totalorder %s159, %s160
    %p174 = scmp.eq.s32.totalorder %s17, 1
    %p175 = por %p173, %p174
    %p177 = scmp.ne.s32.totalorder %s160, %s176
    %p178 = scmp.eq.s32.totalorder %s17, 0
    %p179 = por %p177, %p178
    %p180 = scmp.le.s32.totalorder 1, %s11
    %p181 = scmp.lt.s32.totalorder %s11, 3
    %p182 = pnand %p180, %p181
    %p183 = pneg %p182
    // Predicated region
    $region9: #{pointnet_set_abstraction.1} parent=5 // pred_check
      _
    $region10: #{pointnet_set_abstraction.1} parent=5 // pred_check_branch
      %185 = sbr.rel (%p182) target = $region12
    $region11: #{pointnet_set_abstraction.1} parent=5 // pred_region
      %s186 = ssub.s32 %s11, 1
      // Predicated region
      $region13: #{pointnet_set_abstraction.1} parent=11 // pred_check
        %p187 = pneg %p81
      $region14: #{pointnet_set_abstraction.1} parent=11 // pred_check_branch
        %189 = sbr.rel (%p187) target = $region16
      $region15: #{pointnet_set_abstraction.1} parent=11 // pred_region
        _
      $region16: #{pointnet_set_abstraction.1} parent=11 // pred_fallthru
        _
      // Predicated region
      $region17: #{pointnet_set_abstraction.1} parent=11 // pred_check
        %p190 = pneg %p102
      $region18: #{pointnet_set_abstraction.1} parent=11 // pred_check_branch
        %192 = sbr.rel (%p190) target = $region20
      $region19: #{pointnet_set_abstraction.1} parent=11 // pred_region
        _
      $region20: #{pointnet_set_abstraction.1} parent=11 // pred_fallthru
        _
      // Predicated region
      $region21: #{pointnet_set_abstraction.1} parent=11 // pred_check
        %p193 = pneg %p123
      $region22: #{pointnet_set_abstraction.1} parent=11 // pred_check_branch
        %195 = sbr.rel (%p193) target = $region24
      $region23: #{pointnet_set_abstraction.1} parent=11 // pred_region
        _
      $region24: #{pointnet_set_abstraction.1} parent=11 // pred_fallthru
        _
      // Predicated region
      $region25: #{pointnet_set_abstraction.1} parent=11 // pred_check
        %p196 = pneg %p144
      $region26: #{pointnet_set_abstraction.1} parent=11 // pred_check_branch
        %198 = sbr.rel (%p196) target = $region28
      $region27: #{pointnet_set_abstraction.1} parent=11 // pred_region
        _
      $region28: #{pointnet_set_abstraction.1} parent=11 // pred_fallthru
        _
    $region12: #{pointnet_set_abstraction.1} parent=5 // pred_fallthru
      _
    %p199 = scmp.lt.s32.totalorder %s11, 2
    // Predicated region
    $region29: #{pointnet_set_abstraction.1} parent=5 // pred_check
      %p200 = pneg %p199
    $region30: #{pointnet_set_abstraction.1} parent=5 // pred_check_branch
      %202 = sbr.rel (%p200) target = $region32
    $region31: #{pointnet_set_abstraction.1} parent=5 // pred_region
      // Predicated region
      $region33: #{pointnet_set_abstraction.1} parent=31 // pred_check
        %p203 = pneg %p54
      $region34: #{pointnet_set_abstraction.1} parent=31 // pred_check_branch
        %205 = sbr.rel (%p203) target = $region36
      $region35: #{pointnet_set_abstraction.1} parent=31 // pred_region
        %s206 = smul.u32 8, %s19
        %s207 = smul.u32 2, %s20
        %p208 = scmp.lt.s32.totalorder %s18, 1
        %s209 = scalar_select %p208, %s18, 1
        %p210 = scmp.lt.s32.totalorder %s206, 7
        %s211 = scalar_select %p210, %s206, 7
        %p212 = scmp.lt.s32.totalorder %s207, 1
        %s213 = scalar_select %p212, %s207, 1
        %s214 = smul.addr %s211, 2
        %s215 = sadd.s32 %s213, %s214
        %s216 = smul.addr %s209, 16
        %s217 = sadd.s32 %s215, %s216
        %s218 = smul.addr %s217, 4
        %s219 = scalar_lea.vmem %s0, %s218
        %s220 = smul.u32 8, %s19
        %s221 = smul.u32 2, %s20
      $region36: #{pointnet_set_abstraction.1} parent=31 // pred_fallthru
        _
    $region32: #{pointnet_set_abstraction.1} parent=5 // pred_fallthru
      _
    %p222 = scmp.le.s32.totalorder 1, %s11
    %p223 = scmp.lt.s32.totalorder %s11, 3
    %p224 = pnand %p222, %p223
    %p225 = pneg %p224
    // Predicated region
    $region37: #{pointnet_set_abstraction.1} parent=5 // pred_check
      _
    $region38: #{pointnet_set_abstraction.1} parent=5 // pred_check_branch
      %227 = sbr.rel (%p224) target = $region40
    $region39: #{pointnet_set_abstraction.1} parent=5 // pred_region
      %s228 = ssub.s32 %s11, 1
      %s229 = smul.u32 8, %s22
      %s230 = smul.u32 2, %s23
      %p231 = scmp.lt.s32.totalorder %s21, 1
      %s232 = scalar_select %p231, %s21, 1
      %p233 = scmp.lt.s32.totalorder %s229, 7
      %s234 = scalar_select %p233, %s229, 7
      %p235 = scmp.lt.s32.totalorder %s230, 1
      %s236 = scalar_select %p235, %s230, 1
      %s237 = smul.addr %s234, 2
      %s238 = sadd.s32 %s236, %s237
      %s239 = smul.addr %s232, 16
      %s240 = sadd.s32 %s238, %s239
      %s241 = smul.addr %s240, 4
      %s242 = scalar_lea.vmem %s0, %s241
      %p243 = pneg %p60
      %p244 = pneg %p57
      %p245 = pneg %p81
      %p246 = pneg %p78
      %p247 = pneg %p102
      %p248 = pneg %p99
      %p249 = pneg %p123
      %p250 = pneg %p120
      %p251 = pneg %p144
      %p252 = pneg %p141
      %p253 = pneg %p172
      %p254 = pneg %p169
      %p255 = scmp.lt.s32.totalorder %s21, 1
      %s256 = scalar_select %p255, %s21, 1
      %p257 = scmp.lt.s32.totalorder %s22, 0
      %s258 = scalar_select %p257, %s22, 0
      %s259 = sadd.s32 %s258, %s256
      %s260 = smul.addr %s259, 8
      %s261 = scalar_lea.vmem %s5, %s260
      %s262 = smul.u32 8, %s22
      %s263 = smul.u32 2, %s23
      %p264 = scmp.lt.s32.totalorder %s21, 1
      %s265 = scalar_select %p264, %s21, 1
      %p266 = scmp.lt.s32.totalorder %s262, 7
      %s267 = scalar_select %p266, %s262, 7
      %p268 = scmp.lt.s32.totalorder %s263, 1
      %s269 = scalar_select %p268, %s263, 1
      %s270 = smul.addr %s267, 2
      %s271 = sadd.s32 %s269, %s270
      %s272 = smul.addr %s265, 16
      %s273 = sadd.s32 %s271, %s272
      %s274 = smul.addr %s273, 4
      %s275 = scalar_lea.vmem %s0, %s274
      %s276 = smul.u32 8, %s22
      %s277 = smul.u32 2, %s23
      %p278 = scmp.lt.s32.totalorder %s21, 1
      %s279 = scalar_select %p278, %s21, 1
      %p280 = scmp.lt.s32.totalorder %s22, 0
      %s281 = scalar_select %p280, %s22, 0
      %s282 = sadd.s32 %s281, %s279
      %s283 = smul.addr %s282, 8
      %s284 = scalar_lea.vmem %s5, %s283
      %v286 = vld [vmem:[%s275] sm:$0xf]
      %v287 = vld [vmem:[%s275 + $0x4] sm:$0xf]
      %v288 = vld [vmem:[%s275 + $0x8] sm:$0xf]
      %v289 = vld [vmem:[%s275 + $0xc] sm:$0xf]
      %v290 = vld [vmem:[%s275 + $0x10] sm:$0xf]
      %v291 = vld [vmem:[%s275 + $0x14] sm:$0xf]
      %v292 = vld [vmem:[%s275 + $0x18] sm:$0xf]
      %v293 = vld [vmem:[%s275 + $0x1c] sm:$0xf]
      %v294 = vld [vmem:[%s275 + $0x20] sm:$0xf]
      %v295 = vld [vmem:[%s275 + $0x24] sm:$0xf]
      %v296 = vld [vmem:[%s275 + $0x28] sm:$0xf]
      %v297 = vld [vmem:[%s275 + $0x2c] sm:$0xf]
      %v298 = vld [vmem:[%s275 + $0x30] sm:$0xf]
      %v299 = vld [vmem:[%s275 + $0x34] sm:$0xf]
      %v300 = vld [vmem:[%s275 + $0x38] sm:$0xf]
      %v301 = vld [vmem:[%s275 + $0x3c] sm:$0xf]
      %v302 = vld [vmem:[%s1] sm:$0xf]
      %v303 = vld [vmem:[%s2] sm:$0x1]
      %v305 = vlaneseq
      %v306 = vshrl.u32 %v305, 7
      %v307 = vsub.s32 0, %v306
      %v308 = vrot.slane %v303, %v307
      %v326 = vunpack.c.l.b16 %v286
      %v327 = vunpack.c.l.b16 %v287
      %v328 = vunpack.c.l.b16 %v288
      %v329 = vunpack.c.l.b16 %v289
      %v330 = vunpack.c.l.b16 %v290
      %v331 = vunpack.c.l.b16 %v291
      %v332 = vunpack.c.l.b16 %v292
      %v333 = vunpack.c.l.b16 %v293
      %v334 = vunpack.c.l.b16 %v294
      %v335 = vunpack.c.l.b16 %v295
      %v336 = vunpack.c.l.b16 %v296
      %v337 = vunpack.c.l.b16 %v297
      %v338 = vunpack.c.l.b16 %v298
      %v339 = vunpack.c.l.b16 %v299
      %v340 = vunpack.c.l.b16 %v300
      %v341 = vunpack.c.l.b16 %v301
      %v342 = vpack.c.b16 %v327, %v326
      %v343 = vpack.c.b16 %v329, %v328
      %v344 = vpack.c.b16 %v331, %v330
      %v345 = vpack.c.b16 %v333, %v332
      %v346 = vpack.c.b16 %v335, %v334
      %v347 = vpack.c.b16 %v337, %v336
      %v348 = vpack.c.b16 %v339, %v338
      %v349 = vpack.c.b16 %v341, %v340
      %vm350 = vcmask 56320
      %v352 = vsel %vm350, %v342, 0
      %v355 = vsel %vm350, %v343, 0
      %v358 = vsel %vm350, %v344, 0
      %v361 = vsel %vm350, %v345, 0
      %v364 = vsel %vm350, %v346, 0
      %v367 = vsel %vm350, %v347, 0
      %v370 = vsel %vm350, %v348, 0
      %v373 = vsel %vm350, %v349, 0
      %vm375 = vcmask 1042432
      %vm376 = vcmask 1043456
      %v377 = vsel %vm375, 4294967295, 65535
      %v378 = vsel %vm376, %v377, 0
      %v380 = vand.u32 %v302, %v378
      %382 = vmatprep.subr.bf16.mxu0 0
      %383 = vmatpush1.bf16.msra.mxu0 %v380
      %384 = vmatprep.subr.bf16.mxu0 0
      %385 = vmatpush1.bf16.msra.mxu0 0
      %386 = vmatprep.subr.bf16.mxu0 0
      %387 = vmatpush1.bf16.msra.mxu0 0
      %388 = vmatprep.subr.bf16.mxu0 0
      %389 = vmatpush1.bf16.msra.mxu0 0
      %390 = vmatprep.subr.bf16.mxu0 0
      %391 = vmatpush1.bf16.msra.mxu0 0
      %392 = vmatprep.subr.bf16.mxu0 0
      %393 = vmatpush1.bf16.msra.mxu0 0
      %394 = vmatprep.subr.bf16.mxu0 0
      %395 = vmatpush1.bf16.msra.mxu0 0
      %396 = vmatprep.subr.bf16.mxu0 0
      %397 = vmatpush1.bf16.msra.mxu0 0
      %398 = vmatprep.subr.bf16.mxu0 0
      %399 = vmatpush1.bf16.msra.mxu0 0
      %400 = vmatprep.subr.bf16.mxu0 0
      %401 = vmatpush1.bf16.msra.mxu0 0
      %402 = vmatprep.subr.bf16.mxu0 0
      %403 = vmatpush1.bf16.msra.mxu0 0
      %404 = vmatprep.subr.bf16.mxu0 0
      %405 = vmatpush1.bf16.msra.mxu0 0
      %406 = vmatprep.subr.bf16.mxu0 0
      %407 = vmatpush1.bf16.msra.mxu0 0
      %408 = vmatprep.subr.bf16.mxu0 0
      %409 = vmatpush1.bf16.msra.mxu0 0
      %410 = vmatprep.subr.bf16.mxu0 0
      %411 = vmatpush1.bf16.msra.mxu0 0
      %412 = vmatprep.subr.bf16.mxu0 0
      %413 = vmatpush1.bf16.msra.mxu0 0
      %414 = vmatprep.mubr.bf16.mxu0 0
      %415 = vmatmul.mubr.bf16.gmra.mrb[0].mxu0 %v352
      %v416 = vpop.f32.mrb[0].mxu0
      %v417 = vadd.f32 %v308, %v416
      %v418 = vpop.f32.mrb[0].mxu0
      %v419 = vpop.f32.mrb[0].mxu0
      %v420 = vadd.f32 %v308, %v419
      %v421 = vpop.f32.mrb[0].mxu0
      %422 = vmatprep.mubr.bf16.mxu0 0
      %423 = vmatmul.mubr.bf16.gmra.mrb[0].mxu0 %v355
      %v424 = vpop.f32.mrb[0].mxu0
      %v425 = vadd.f32 %v308, %v424
      %v426 = vpop.f32.mrb[0].mxu0
      %v427 = vpop.f32.mrb[0].mxu0
      %v428 = vadd.f32 %v308, %v427
      %v429 = vpop.f32.mrb[0].mxu0
      %430 = vmatprep.mubr.bf16.mxu0 0
      %431 = vmatmul.mubr.bf16.gmra.mrb[0].mxu0 %v358
      %v432 = vpop.f32.mrb[0].mxu0
      %v433 = vadd.f32 %v308, %v432
      %v434 = vpop.f32.mrb[0].mxu0
      %v435 = vpop.f32.mrb[0].mxu0
      %v436 = vadd.f32 %v308, %v435
      %v437 = vpop.f32.mrb[0].mxu0
      %438 = vmatprep.mubr.bf16.mxu0 0
      %439 = vmatmul.mubr.bf16.gmra.mrb[0].mxu0 %v361
      %v440 = vpop.f32.mrb[0].mxu0
      %v441 = vadd.f32 %v308, %v440
      %v442 = vpop.f32.mrb[0].mxu0
      %v443 = vpop.f32.mrb[0].mxu0
      %v444 = vadd.f32 %v308, %v443
      %v445 = vpop.f32.mrb[0].mxu0
      %446 = vmatprep.mubr.bf16.mxu0 0
      %447 = vmatmul.mubr.bf16.gmra.mrb[0].mxu0 %v364
      %v448 = vpop.f32.mrb[0].mxu0
      %v449 = vadd.f32 %v308, %v448
      %v450 = vpop.f32.mrb[0].mxu0
      %v451 = vpop.f32.mrb[0].mxu0
      %v452 = vadd.f32 %v308, %v451
      %v453 = vpop.f32.mrb[0].mxu0
      %454 = vmatprep.mubr.bf16.mxu0 0
      %455 = vmatmul.mubr.bf16.gmra.mrb[0].mxu0 %v367
      %v456 = vpop.f32.mrb[0].mxu0
      %v457 = vadd.f32 %v308, %v456
      %v458 = vpop.f32.mrb[0].mxu0
      %v459 = vpop.f32.mrb[0].mxu0
      %v460 = vadd.f32 %v308, %v459
      %v461 = vpop.f32.mrb[0].mxu0
      %462 = vmatprep.mubr.bf16.mxu0 0
      %463 = vmatmul.mubr.bf16.gmra.mrb[0].mxu0 %v370
      %v464 = vpop.f32.mrb[0].mxu0
      %v465 = vadd.f32 %v308, %v464
      %v466 = vpop.f32.mrb[0].mxu0
      %v467 = vpop.f32.mrb[0].mxu0
      %v468 = vadd.f32 %v308, %v467
      %v469 = vpop.f32.mrb[0].mxu0
      %470 = vmatprep.mubr.bf16.mxu0 0
      %471 = vmatmul.mubr.bf16.gmra.mrb[0].mxu0 %v373
      %v472 = vpop.f32.mrb[0].mxu0
      %v473 = vadd.f32 %v308, %v472
      %v474 = vpop.f32.mrb[0].mxu0
      %v475 = vpop.f32.mrb[0].mxu0
      %v476 = vadd.f32 %v308, %v475
      %v477 = vpop.f32.mrb[0].mxu0
      %478 = vdwg.mxu0
      %v479 = vpack.c.bf16 %v420, %v417
      %v480 = vpack.c.bf16 %v428, %v425
      %v481 = vpack.c.bf16 %v436, %v433
      %v482 = vpack.c.bf16 %v444, %v441
      %v483 = vpack.c.bf16 %v452, %v449
      %v484 = vpack.c.bf16 %v460, %v457
      %v485 = vpack.c.bf16 %v468, %v465
      %v486 = vpack.c.bf16 %v476, %v473
      %v487 = vmax.bf16 %v479, 0
      %v488 = vmax.bf16 %v480, 0
      %v489 = vmax.bf16 %v481, 0
      %v490 = vmax.bf16 %v482, 0
      %v491 = vmax.bf16 %v483, 0
      %v492 = vmax.bf16 %v484, 0
      %v493 = vmax.bf16 %v485, 0
      %v494 = vmax.bf16 %v486, 0
      %v495 = vld [vmem:[%s3] sm:$0xf]
      %v496 = vld [vmem:[%s3 + $0x4] sm:$0xf]
      %v497 = vld [vmem:[%s3 + $0x8] sm:$0xf]
      %v498 = vld [vmem:[%s3 + $0xc] sm:$0xf]
      %v499 = vld [vmem:[%s3 + $0x10] sm:$0xf]
      %v500 = vld [vmem:[%s3 + $0x14] sm:$0xf]
      %v501 = vld [vmem:[%s3 + $0x18] sm:$0xf]
      %v502 = vld [vmem:[%s3 + $0x1c] sm:$0xf]
      %v503 = vld [vmem:[%s3 + $0x20] sm:$0xf]
      %v504 = vld [vmem:[%s3 + $0x24] sm:$0xf]
      %v505 = vld [vmem:[%s3 + $0x28] sm:$0xf]
      %v506 = vld [vmem:[%s3 + $0x2c] sm:$0xf]
      %v507 = vld [vmem:[%s3 + $0x30] sm:$0xf]
      %v508 = vld [vmem:[%s3 + $0x34] sm:$0xf]
      %v509 = vld [vmem:[%s3 + $0x38] sm:$0xf]
      %v510 = vld [vmem:[%s3 + $0x3c] sm:$0xf]
      %v527 = vunpack.c.l.b16 %v495
      %v528 = vunpack.c.l.b16 %v496
      %v529 = vunpack.c.l.b16 %v497
      %v530 = vunpack.c.l.b16 %v498
      %v531 = vunpack.c.l.b16 %v499
      %v532 = vunpack.c.l.b16 %v500
      %v533 = vunpack.c.l.b16 %v501
      %v534 = vunpack.c.l.b16 %v502
      %v535 = vunpack.c.l.b16 %v503
      %v536 = vunpack.c.l.b16 %v504
      %v537 = vunpack.c.l.b16 %v505
      %v538 = vunpack.c.l.b16 %v506
      %v539 = vunpack.c.l.b16 %v507
      %v540 = vunpack.c.l.b16 %v508
      %v541 = vunpack.c.l.b16 %v509
      %v542 = vunpack.c.l.b16 %v510
      %v543 = vpack.c.b16 %v528, %v527
      %v544 = vpack.c.b16 %v530, %v529
      %v545 = vpack.c.b16 %v532, %v531
      %v546 = vpack.c.b16 %v534, %v533
      %v547 = vpack.c.b16 %v536, %v535
      %v548 = vpack.c.b16 %v538, %v537
      %v549 = vpack.c.b16 %v540, %v539
      %v550 = vpack.c.b16 %v542, %v541
      %559 = vmatprep.subr.bf16.mxu0 0
      %560 = vmatpush1.bf16.msra.mxu0 %v543
      %561 = vmatprep.subr.bf16.mxu0 0
      %562 = vmatpush1.bf16.msra.mxu0 %v544
      %563 = vmatprep.subr.bf16.mxu0 0
      %564 = vmatpush1.bf16.msra.mxu0 %v545
      %565 = vmatprep.subr.bf16.mxu0 0
      %566 = vmatpush1.bf16.msra.mxu0 %v546
      %567 = vmatprep.subr.bf16.mxu0 0
      %568 = vmatpush1.bf16.msra.mxu0 %v547
      %569 = vmatprep.subr.bf16.mxu0 0
      %570 = vmatpush1.bf16.msra.mxu0 %v548
      %571 = vmatprep.subr.bf16.mxu0 0
      %572 = vmatpush1.bf16.msra.mxu0 %v549
      %573 = vmatprep.subr.bf16.mxu0 0
      %574 = vmatpush1.bf16.msra.mxu0 %v550
      %575 = vmatprep.subr.bf16.mxu0 0
      %576 = vmatpush1.bf16.msra.mxu0 0
      %577 = vmatprep.subr.bf16.mxu0 0
      %578 = vmatpush1.bf16.msra.mxu0 0
      %579 = vmatprep.subr.bf16.mxu0 0
      %580 = vmatpush1.bf16.msra.mxu0 0
      %581 = vmatprep.subr.bf16.mxu0 0
      %582 = vmatpush1.bf16.msra.mxu0 0
      %583 = vmatprep.subr.bf16.mxu0 0
      %584 = vmatpush1.bf16.msra.mxu0 0
      %585 = vmatprep.subr.bf16.mxu0 0
      %586 = vmatpush1.bf16.msra.mxu0 0
      %587 = vmatprep.subr.bf16.mxu0 0
      %588 = vmatpush1.bf16.msra.mxu0 0
      %589 = vmatprep.subr.bf16.mxu0 0
      %590 = vmatpush1.bf16.msra.mxu0 0
      %591 = vmatprep.mubr.bf16.mxu0 0
      %592 = vmatmul.mubr.bf16.gmra.mrb[0].mxu0 %v487
      %v593 = vpop.f32.mrb[0].mxu0
      %v594 = vadd.f32 0.0, %v593
      %v595 = vpop.f32.mrb[0].mxu0
      %v596 = vpop.f32.mrb[0].mxu0
      %v597 = vadd.f32 0.0, %v596
      %v598 = vpop.f32.mrb[0].mxu0
      %599 = vmatprep.mubr.bf16.mxu0 0
      %600 = vmatmul.mubr.bf16.gmra.mrb[0].mxu0 %v488
      %v601 = vpop.f32.mrb[0].mxu0
      %v602 = vadd.f32 0.0, %v601
      %v603 = vpop.f32.mrb[0].mxu0
      %v604 = vpop.f32.mrb[0].mxu0
      %v605 = vadd.f32 0.0, %v604
      %v606 = vpop.f32.mrb[0].mxu0
      %607 = vmatprep.mubr.bf16.mxu0 0
      %608 = vmatmul.mubr.bf16.gmra.mrb[0].mxu0 %v489
      %v609 = vpop.f32.mrb[0].mxu0
      %v610 = vadd.f32 0.0, %v609
      %v611 = vpop.f32.mrb[0].mxu0
      %v612 = vpop.f32.mrb[0].mxu0
      %v613 = vadd.f32 0.0, %v612
      %v614 = vpop.f32.mrb[0].mxu0
      %615 = vmatprep.mubr.bf16.mxu0 0
      %616 = vmatmul.mubr.bf16.gmra.mrb[0].mxu0 %v490
      %v617 = vpop.f32.mrb[0].mxu0
      %v618 = vadd.f32 0.0, %v617
      %v619 = vpop.f32.mrb[0].mxu0
      %v620 = vpop.f32.mrb[0].mxu0
      %v621 = vadd.f32 0.0, %v620
      %v622 = vpop.f32.mrb[0].mxu0
      %623 = vmatprep.mubr.bf16.mxu0 0
      %624 = vmatmul.mubr.bf16.gmra.mrb[0].mxu0 %v491
      %v625 = vpop.f32.mrb[0].mxu0
      %v626 = vadd.f32 0.0, %v625
      %v627 = vpop.f32.mrb[0].mxu0
      %v628 = vpop.f32.mrb[0].mxu0
      %v629 = vadd.f32 0.0, %v628
      %v630 = vpop.f32.mrb[0].mxu0
      %631 = vmatprep.mubr.bf16.mxu0 0
      %632 = vmatmul.mubr.bf16.gmra.mrb[0].mxu0 %v492
      %v633 = vpop.f32.mrb[0].mxu0
      %v634 = vadd.f32 0.0, %v633
      %v635 = vpop.f32.mrb[0].mxu0
      %v636 = vpop.f32.mrb[0].mxu0
      %v637 = vadd.f32 0.0, %v636
      %v638 = vpop.f32.mrb[0].mxu0
      %639 = vmatprep.mubr.bf16.mxu0 0
      %640 = vmatmul.mubr.bf16.gmra.mrb[0].mxu0 %v493
      %v641 = vpop.f32.mrb[0].mxu0
      %v642 = vadd.f32 0.0, %v641
      %v643 = vpop.f32.mrb[0].mxu0
      %v644 = vpop.f32.mrb[0].mxu0
      %v645 = vadd.f32 0.0, %v644
      %v646 = vpop.f32.mrb[0].mxu0
      %647 = vmatprep.mubr.bf16.mxu0 0
      %648 = vmatmul.mubr.bf16.gmra.mrb[0].mxu0 %v494
      %v649 = vpop.f32.mrb[0].mxu0
      %v650 = vadd.f32 0.0, %v649
      %v651 = vpop.f32.mrb[0].mxu0
      %v652 = vpop.f32.mrb[0].mxu0
      %v653 = vadd.f32 0.0, %v652
      %v654 = vpop.f32.mrb[0].mxu0
      %655 = vdwg.mxu0
      %s656 = smul.u32 %s23, 16
      %v657 = vlaneseq
      %v658 = vshrl.u32 %v657, 7
      %v659 = vadd.s32 %v658, 8
      %v660 = vstv %s656
      %v661 = vadd.s32 %v660, %v658
      %v662 = vadd.s32 %v660, %v659
      %vm663 = vcmp.lt.s32.totalorder %v661, 8
      %vm664 = vcmp.lt.s32.totalorder %v662, 8
      %v665 = vsel %vm663, 1, 0
      %v666 = vsel %vm664, 1, 0
      %vm667 = vcmp.eq.s32.totalorder %v665, 1
      %vm668 = vcmp.eq.s32.totalorder %v666, 1
      %v669 = vsel %vm667, %v594, -inf
      %v670 = vsel %vm668, %v597, -inf
      %v671 = vsel %vm667, %v602, -inf
      %v672 = vsel %vm668, %v605, -inf
      %v673 = vsel %vm667, %v610, -inf
      %v674 = vsel %vm668, %v613, -inf
      %v675 = vsel %vm667, %v618, -inf
      %v676 = vsel %vm668, %v621, -inf
      %v677 = vsel %vm667, %v626, -inf
      %v678 = vsel %vm668, %v629, -inf
      %v679 = vsel %vm667, %v634, -inf
      %v680 = vsel %vm668, %v637, -inf
      %v681 = vsel %vm667, %v642, -inf
      %v682 = vsel %vm668, %v645, -inf
      %v683 = vsel %vm667, %v650, -inf
      %v684 = vsel %vm668, %v653, -inf
      %v685 = vmax.f32 %v669, %v670
      %v686 = vrot.slane %v685, 4
      %v687 = vmax.f32 %v685, %v686
      %v688 = vrot.slane %v687, 2
      %v689 = vmax.f32 %v687, %v688
      %v690 = vrot.slane %v689, 1
      %v691 = vmax.f32 %v689, %v690
      %v692 = vmax.f32 %v671, %v672
      %v693 = vrot.slane %v692, 4
      %v694 = vmax.f32 %v692, %v693
      %v695 = vrot.slane %v694, 2
      %v696 = vmax.f32 %v694, %v695
      %v697 = vrot.slane %v696, 1
      %v698 = vmax.f32 %v696, %v697
      %v699 = vmax.f32 %v673, %v674
      %v700 = vrot.slane %v699, 4
      %v701 = vmax.f32 %v699, %v700
      %v702 = vrot.slane %v701, 2
      %v703 = vmax.f32 %v701, %v702
      %v704 = vrot.slane %v703, 1
      %v705 = vmax.f32 %v703, %v704
      %v706 = vmax.f32 %v675, %v676
      %v707 = vrot.slane %v706, 4
      %v708 = vmax.f32 %v706, %v707
      %v709 = vrot.slane %v708, 2
      %v710 = vmax.f32 %v708, %v709
      %v711 = vrot.slane %v710, 1
      %v712 = vmax.f32 %v710, %v711
      %v713 = vmax.f32 %v677, %v678
      %v714 = vrot.slane %v713, 4
      %v715 = vmax.f32 %v713, %v714
      %v716 = vrot.slane %v715, 2
      %v717 = vmax.f32 %v715, %v716
      %v718 = vrot.slane %v717, 1
      %v719 = vmax.f32 %v717, %v718
      %v720 = vmax.f32 %v679, %v680
      %v721 = vrot.slane %v720, 4
      %v722 = vmax.f32 %v720, %v721
      %v723 = vrot.slane %v722, 2
      %v724 = vmax.f32 %v722, %v723
      %v725 = vrot.slane %v724, 1
      %v726 = vmax.f32 %v724, %v725
      %v727 = vmax.f32 %v681, %v682
      %v728 = vrot.slane %v727, 4
      %v729 = vmax.f32 %v727, %v728
      %v730 = vrot.slane %v729, 2
      %v731 = vmax.f32 %v729, %v730
      %v732 = vrot.slane %v731, 1
      %v733 = vmax.f32 %v731, %v732
      %v734 = vmax.f32 %v683, %v684
      %v735 = vrot.slane %v734, 4
      %v736 = vmax.f32 %v734, %v735
      %v737 = vrot.slane %v736, 2
      %v738 = vmax.f32 %v736, %v737
      %v739 = vrot.slane %v738, 1
      %v740 = vmax.f32 %v738, %v739
      %p741 = scmp.eq.s32.totalorder %s23, 0
      // Predicated region
      $region41: #{pointnet_set_abstraction.1} parent=39 // pred_check
        %p742 = pneg %p741
      $region42: #{pointnet_set_abstraction.1} parent=39 // pred_check_branch
        %744 = sbr.rel (%p742) target = $region44
      $region43: #{pointnet_set_abstraction.1} parent=39 // pred_region
        %vm753 = vcmask 1041409
        %v754 = vsel %vm753, %v698, %v691
        %vm755 = vcmask 1042434
        %v756 = vsel %vm755, %v705, %v754
        %vm757 = vcmask 1043459
        %v758 = vsel %vm757, %v712, %v756
        %vm759 = vcmask 1044484
        %v760 = vsel %vm759, %v719, %v758
        %vm761 = vcmask 1045509
        %v762 = vsel %vm761, %v726, %v760
        %vm763 = vcmask 1046534
        %v764 = vsel %vm763, %v733, %v762
        %vm765 = vcmask 1047559
        %v766 = vsel %vm765, %v740, %v764
        %768 = vst [vmem:[%s284] sm:$0xff] %v766
      $region44: #{pointnet_set_abstraction.1} parent=39 // pred_fallthru
        _
      %p769 = scmp.gt.s32.totalorder %s23, 0
      // Predicated region
      $region45: #{pointnet_set_abstraction.1} parent=39 // pred_check
        %p770 = pneg %p769
      $region46: #{pointnet_set_abstraction.1} parent=39 // pred_check_branch
        %772 = sbr.rel (%p770) target = $region48
      $region47: #{pointnet_set_abstraction.1} parent=39 // pred_region
        %v773 = vld [vmem:[%s284] sm:$0xff]
        %vm782 = vcmask 1041409
        %v783 = vsel %vm782, %v698, %v691
        %vm784 = vcmask 1042434
        %v785 = vsel %vm784, %v705, %v783
        %vm786 = vcmask 1043459
        %v787 = vsel %vm786, %v712, %v785
        %vm788 = vcmask 1044484
        %v789 = vsel %vm788, %v719, %v787
        %vm790 = vcmask 1045509
        %v791 = vsel %vm790, %v726, %v789
        %vm792 = vcmask 1046534
        %v793 = vsel %vm792, %v733, %v791
        %vm794 = vcmask 1047559
        %v795 = vsel %vm794, %v740, %v793
        %v797 = vmax.f32 %v773, %v795
        %798 = vst [vmem:[%s284] sm:$0xff] %v797
      $region48: #{pointnet_set_abstraction.1} parent=39 // pred_fallthru
        _
      // Predicated region
      $region49: #{pointnet_set_abstraction.1} parent=39 // pred_check
        %p799 = pneg %p741
      $region50: #{pointnet_set_abstraction.1} parent=39 // pred_check_branch
        %801 = sbr.rel (%p799) target = $region52
      $region51: #{pointnet_set_abstraction.1} parent=39 // pred_region
        %v802 = vld [vmem:[%s4] sm:$0x1]
        %v803 = vld [vmem:[%s284] sm:$0xff]
        %v805 = vlaneseq
        %v806 = vshrl.u32 %v805, 7
        %v807 = vsub.s32 0, %v806
        %v808 = vrot.slane %v802, %v807
        %v810 = vadd.f32 %v803, %v808
        %v811 = vmax.f32 %v810, 0.0
        %812 = vst [vmem:[%s284] sm:$0xff] %v811
      $region52: #{pointnet_set_abstraction.1} parent=39 // pred_fallthru
        _
      %p813 = scmp.lt.s32.totalorder %s21, 1
      %s814 = scalar_select %p813, %s21, 1
      %p815 = scmp.lt.s32.totalorder %s22, 0
      %s816 = scalar_select %p815, %s22, 0
      %s817 = sadd.s32 %s816, %s814
      %s818 = smul.addr %s817, 8
      %s819 = scalar_lea.vmem %s5, %s818
      // Predicated region
      $region53: #{pointnet_set_abstraction.1} parent=39 // pred_check
        %p820 = pneg %p169
      $region54: #{pointnet_set_abstraction.1} parent=39 // pred_check_branch
        %822 = sbr.rel (%p820) target = $region56
      $region55: #{pointnet_set_abstraction.1} parent=39 // pred_region
        _
      $region56: #{pointnet_set_abstraction.1} parent=39 // pred_fallthru
        _
    $region40: #{pointnet_set_abstraction.1} parent=5 // pred_fallthru
      _
    %p823 = scmp.le.s32.totalorder 2, %s11
    // Predicated region
    $region57: #{pointnet_set_abstraction.1} parent=5 // pred_check
      %p824 = pneg %p823
    $region58: #{pointnet_set_abstraction.1} parent=5 // pred_check_branch
      %826 = sbr.rel (%p824) target = $region60
    $region59: #{pointnet_set_abstraction.1} parent=5 // pred_region
      %s827 = ssub.s32 %s11, 2
      // Predicated region
      $region61: #{pointnet_set_abstraction.1} parent=59 // pred_check
        %p828 = pneg %p175
      $region62: #{pointnet_set_abstraction.1} parent=59 // pred_check_branch
        %830 = sbr.rel (%p828) target = $region64
      $region63: #{pointnet_set_abstraction.1} parent=59 // pred_region
        %p831 = scmp.lt.s32.totalorder %s24, 1
        %s832 = scalar_select %p831, %s24, 1
        %p833 = scmp.lt.s32.totalorder %s25, 0
        %s834 = scalar_select %p833, %s25, 0
        %s835 = sadd.s32 %s834, %s832
        %s836 = smul.addr %s835, 8
        %s837 = scalar_lea.vmem %s5, %s836
      $region64: #{pointnet_set_abstraction.1} parent=59 // pred_fallthru
        _
    $region60: #{pointnet_set_abstraction.1} parent=5 // pred_fallthru
      _
  $region6: #{pointnet_set_abstraction.1} parent=0 // loop_footer
    %s15 = sadd.s32 1, %s11
  $region7: #{pointnet_set_abstraction.1} parent=0 // loop_footer_branch
    %10 = sbr.rel target = $region3
  $region8: #{pointnet_set_abstraction.1} parent=0 // loop_exit
    _

</llo_original>
